<compile_context>
chip_gen: v5e
topology: v5e:2x2
jax: 0.10.0
libtpu: 0.0.40
codegen_flags: <defaults>
</compile_context>

<pallas_src>
import jax
import jax.numpy as jnp
from jax.experimental import pallas as pl
from jax.experimental.pallas import tpu as pltpu


def _mean_max_pool_kernel(hidden_ref, mask_ref, max_ref, mean_ref,
                          sum_acc, max_acc, cnt_acc):
    """Streaming masked mean / max reduction over the sequence grid axis."""
    s = pl.program_id(1)

    # ---- init running accumulators on the first sequence block
    @pl.when(s == 0)
    def _init():
        sum_acc[...] = jnp.zeros_like(sum_acc)
        max_acc[...] = jnp.full_like(max_acc, -jnp.inf)
        cnt_acc[...] = jnp.zeros_like(cnt_acc)

    h = hidden_ref[...].astype(jnp.float32)     # (Bt, St, Hp)
    m = mask_ref[...].astype(jnp.float32)       # (Bt, St)
    neg = (m - 1.0) * 10000.0                   # 2-D precompute of additive mask term
    m3 = m[:, :, None]

    masked = h * m3                             # shared by mean & max paths

    # ---- masked-sum / count accumulation (mean path)
    # TODO(synk): on v7x the masked sum could be offloaded to the idle MXU via
    # a batched 'bs,bsh->bh' contraction to stay HBM-bound; kept on the VPU
    # here for lowering robustness (v5e/v6e are comfortably HBM-bound).
    sum_acc[...] += jnp.sum(masked, axis=1)                        # (Bt, Hp)
    cnt_acc[...] += jnp.sum(m, axis=1, keepdims=True)              # (Bt, 1)

    # ---- masked-max accumulation (same additive -10000 formula as torch)
    max_acc[...] = jnp.maximum(max_acc[...],
                               jnp.max(masked + neg[:, :, None], axis=1))

    # ---- finalize: write lane-dense pooled outputs exactly once
    @pl.when(s == pl.num_programs(1) - 1)
    def _finalize():
        # NOTE: a fully-masked row gives cnt == 0 -> inf/NaN, matching the
        # PyTorch reference exactly.
        max_ref[...] = max_acc[...].astype(max_ref.dtype)
        mean_ref[...] = (sum_acc[...] / cnt_acc[...]).astype(mean_ref.dtype)


def _round_up(x, m):
    return (x + m - 1) // m * m


def _vmem_capacity_bytes():
    try:
        cap = getattr(pltpu.get_tpu_info(), "vmem_capacity_bytes", None)
        if cap:
            return int(cap)
    except Exception:
        pass
    return 64 * 1024 * 1024   # conservative default (v7x-sized)


def _pick_tiles(B, S, Hp, itemsize):
    """Pick (Bt, Bp, St, Sp) and the scoped-VMEM limit, generation-aware."""
    cap = _vmem_capacity_bytes()
    # ~100 MiB working-set budget on v5e/v6e (128 MiB VMEM), ~51 MiB on v7x
    # (64 MiB VMEM); always leave >= 8 MiB of physical headroom.
    budget = min(int(cap * 0.8), cap - 8 * 1024 * 1024)

    # Batch tile: multiple of 8 (2-D mask/output sublane rule) or the full
    # batch.  For B > 8 this gives grid[0] >= 2 so the "parallel" batch axis
    # shards across both v7x TensorCores.
    # TODO(synk): tiny-batch (B <= 8) megacore would need an S-split with a
    # cross-core combine; not worth it for this HBM-bound kernel.
    if B > 8:
        Bt = 8
        Bp = _round_up(B, 8)
    else:
        Bt = B
        Bp = B

    # Per-St-row VMEM cost: double-buffered hidden + mask streams plus ~2
    # tile-sized f32 elementwise temporaries (masked / max-candidate) that
    # Mosaic materializes in VMEM.
    per_st = Bt * (2 * Hp * itemsize + 2 * 4 + 2 * Hp * 4)
    fixed = (2 * 2 * Bt * Hp * 4          # two double-buffered (Bt, Hp) outputs
             + 2 * Bt * Hp * 4            # sum / max accumulators
             + Bt * 128 * 4)              # count accumulator (lane-padded)
    avail = max(budget - fixed, 2 * 1024 * 1024)

    st_budget = max((avail // per_st) // 128 * 128, 128)

    # Choose St so Sp = n_s * St barely exceeds S (minimal zero-padding); no
    # divisor search, no giant fallback block.
    Sp0 = _round_up(S, 128)
    n_s = -(-Sp0 // min(st_budget, Sp0))          # ceil div
    St = _round_up(-(-Sp0 // n_s), 128)
    Sp = St * n_s

    vmem_limit = int(min(budget + 8 * 1024 * 1024, cap - 4 * 1024 * 1024))
    return Bt, Bp, St, Sp, vmem_limit


def mean_max_pooler(hidden_output, attention_mask, weight, bias):
    """hidden_output: (B, S, H), attention_mask: (B, S),
       weight: (H, 2H) f32 (PyTorch Linear layout), bias: (H,)."""
    B, S, H = hidden_output.shape
    itemsize = jnp.dtype(hidden_output.dtype).itemsize

    Hp = _round_up(H, 128)                       # lane-dense last dim
    Bt, Bp, St, Sp, vmem_limit = _pick_tiles(B, S, Hp, itemsize)

    # Zero-padding: padded sequence positions behave exactly like masked
    # tokens (mask == 0); padded batch rows / hidden columns are sliced off.
    hidden_p = jnp.pad(hidden_output, ((0, Bp - B), (0, Sp - S), (0, Hp - H)))
    mask_p = jnp.pad(attention_mask.astype(jnp.float32),
                     ((0, Bp - B), (0, Sp - S)))

    grid = (Bp // Bt, Sp // St)

    hmax, hmean = pl.pallas_call(
        _mean_max_pool_kernel,
        out_shape=(jax.ShapeDtypeStruct((Bp, Hp), hidden_output.dtype),
                   jax.ShapeDtypeStruct((Bp, Hp), hidden_output.dtype)),
        grid_spec=pltpu.PrefetchScalarGridSpec(
            num_scalar_prefetch=0,
            grid=grid,
            in_specs=[
                pl.BlockSpec((Bt, St, Hp), lambda b, s: (b, s, 0)),  # hidden stream
                pl.BlockSpec((Bt, St), lambda b, s: (b, s)),         # mask stream
            ],
            out_specs=[
                pl.BlockSpec((Bt, Hp), lambda b, s: (b, 0)),         # masked max
                pl.BlockSpec((Bt, Hp), lambda b, s: (b, 0)),         # masked mean
            ],
            scratch_shapes=[
                pltpu.VMEM((Bt, Hp), jnp.float32),   # running masked sum
                pltpu.VMEM((Bt, Hp), jnp.float32),   # running masked max
                pltpu.VMEM((Bt, 1), jnp.float32),    # running mask count
            ],
        ),
        compiler_params=pltpu.CompilerParams(
            dimension_semantics=("parallel", "arbitrary"),
            vmem_limit_bytes=vmem_limit,
        ),
    )(hidden_p, mask_p)

    hmax = hmax[:B, :H]
    hmean = hmean[:B, :H]

    # Un-fused Linear(2H -> H) in XLA; mathematically identical to
    # cat([max, mean], -1) @ W.T + b, with properly shaped MXU matmuls.
    out = hmax @ weight[:, :H].T + hmean @ weight[:, H:].T + bias
    return out.astype(hidden_output.dtype)


def mean_max_pooler_ref(hidden_output, attention_mask, weight, bias):
    """Pure-JAX reference mirroring the PyTorch forward."""
    masked = hidden_output * attention_mask[:, :, None]
    hidden_mean = jnp.sum(masked, axis=1) / jnp.sum(
        attention_mask, axis=1, keepdims=True)
    hidden_max = jnp.max(
        masked + ((1.0 - attention_mask) * -10000.0)[:, :, None], axis=1)
    pool_cat = jnp.concatenate([hidden_max, hidden_mean], axis=1)
    return pool_cat @ weight.T + bias


if __name__ == "__main__":
    B, S, H = 2, 8, 32

    key = jax.random.PRNGKey(0)
    k1, k2, k3, _ = jax.random.split(key, 4)

    hidden_output = jax.random.normal(k1, (B, S, H), dtype=jnp.float32)
    # deterministic mask: first few tokens valid per batch row
    lengths = jnp.array([5, 7], dtype=jnp.int32)
    attention_mask = (jnp.arange(S)[None, :] < lengths[:, None]).astype(
        jnp.float32)                                       # (B, S)

    # deterministic Linear(2H -> H) params (PyTorch weight layout: (H, 2H))
    weight = jax.random.normal(k2, (H, 2 * H), dtype=jnp.float32) * 0.05
    bias = jax.random.normal(k3, (H,), dtype=jnp.float32) * 0.05

    out = mean_max_pooler(hidden_output, attention_mask, weight, bias)
    out = jax.block_until_ready(out)

    ref = mean_max_pooler_ref(hidden_output, attention_mask, weight, bias)
    assert out.shape == (B, H)
    assert jnp.allclose(out, ref, atol=1e-4, rtol=1e-4), (
        f"max abs err = {jnp.max(jnp.abs(out - ref))}")

    print("KERNEL_OK")
</pallas_src>

<mosaic_0001>
module attributes {stable_mosaic.version = 11 : i64} {
  func.func @_mean_max_pool_kernel(%arg0: i32, %arg1: i32, %arg2: memref<2x128x128xf32, #tpu.memory_space<vmem>>, %arg3: memref<2x128xf32, #tpu.memory_space<vmem>>, %arg4: memref<2x128xf32, #tpu.memory_space<vmem>>, %arg5: memref<2x128xf32, #tpu.memory_space<vmem>>, %arg6: memref<2x128xf32, #tpu.memory_space<vmem>>, %arg7: memref<2x128xf32, #tpu.memory_space<vmem>>, %arg8: memref<2x1xf32, #tpu.memory_space<vmem>>) attributes {dimension_semantics = [#tpu.dimension_semantics<parallel>, #tpu.dimension_semantics<arbitrary>], iteration_bounds = array<i64: 1, 1>, scalar_prefetch = 0 : i64, scratch_operands = 3 : i64, tpu.core_type = #tpu.core_type<tc>, window_params = [{transform_indices = @transform_0, window_bounds = array<i64: 2, 128, 128>}, {transform_indices = @transform_1, window_bounds = array<i64: 2, 128>}, {transform_indices = @transform_2, window_bounds = array<i64: 2, 128>}, {transform_indices = @transform_3, window_bounds = array<i64: 2, 128>}]} {
    %c0_i32 = arith.constant 0 : i32
    %0 = arith.cmpi eq, %arg1, %c0_i32 : i32
    %1 = arith.extui %0 : i1 to i32
    %c0_i32_0 = arith.constant 0 : i32
    %2 = arith.cmpi ne, %1, %c0_i32_0 : i32
    scf.if %2 {
      %cst_23 = arith.constant 0.000000e+00 : f32
      %31 = vector.broadcast %cst_23 : f32 to vector<2x128xf32>
      %c0_24 = arith.constant 0 : index
      %c0_25 = arith.constant 0 : index
      %32 = vector.load %arg6[%c0_24, %c0_25] : memref<2x128xf32, #tpu.memory_space<vmem>>, vector<2x128xf32>
      tpu.vector_store %arg6[%c0_24, %c0_25], %31 {strides = array<i32>} : memref<2x128xf32, #tpu.memory_space<vmem>>, vector<2x128xf32>,
      %cst_26 = arith.constant 0xFF800000 : f32
      %33 = vector.broadcast %cst_26 : f32 to vector<2x128xf32>
      %c0_27 = arith.constant 0 : index
      %c0_28 = arith.constant 0 : index
      %34 = vector.load %arg7[%c0_27, %c0_28] : memref<2x128xf32, #tpu.memory_space<vmem>>, vector<2x128xf32>
      tpu.vector_store %arg7[%c0_27, %c0_28], %33 {strides = array<i32>} : memref<2x128xf32, #tpu.memory_space<vmem>>, vector<2x128xf32>,
      %cst_29 = arith.constant 0.000000e+00 : f32
      %35 = vector.broadcast %cst_29 : f32 to vector<2x1xf32>
      %c0_30 = arith.constant 0 : index
      %c0_31 = arith.constant 0 : index
      %36 = vector.load %arg8[%c0_30, %c0_31] : memref<2x1xf32, #tpu.memory_space<vmem>>, vector<2x1xf32>
      tpu.vector_store %arg8[%c0_30, %c0_31], %35 {strides = array<i32>} : memref<2x1xf32, #tpu.memory_space<vmem>>, vector<2x1xf32>,
    } else {
    }
    %c0 = arith.constant 0 : index
    %c0_1 = arith.constant 0 : index
    %c0_2 = arith.constant 0 : index
    %3 = vector.load %arg2[%c0, %c0_1, %c0_2] : memref<2x128x128xf32, #tpu.memory_space<vmem>>, vector<2x128x128xf32>
    %c0_3 = arith.constant 0 : index
    %c0_4 = arith.constant 0 : index
    %4 = vector.load %arg3[%c0_3, %c0_4] : memref<2x128xf32, #tpu.memory_space<vmem>>, vector<2x128xf32>
    %cst = arith.constant 1.000000e+00 : f32
    %5 = vector.broadcast %cst : f32 to vector<2x128xf32>
    %6 = arith.subf %4, %5 : vector<2x128xf32>
    %cst_5 = arith.constant 1.000000e+04 : f32
    %7 = vector.broadcast %cst_5 : f32 to vector<2x128xf32>
    %8 = arith.mulf %6, %7 : vector<2x128xf32>
    %9 = vector.shape_cast %4 : vector<2x128xf32> to vector<2x128x1xf32>
    %10 = vector.broadcast %9 : vector<2x128x1xf32> to vector<2x128x128xf32>
    %11 = arith.mulf %3, %10 : vector<2x128x128xf32>
    %c0_6 = arith.constant 0 : index
    %c0_7 = arith.constant 0 : index
    %12 = vector.load %arg6[%c0_6, %c0_7] : memref<2x128xf32, #tpu.memory_space<vmem>>, vector<2x128xf32>
    %cst_8 = arith.constant dense<0.000000e+00> : vector<2x128xf32>
    %13 = vector.multi_reduction <add>, %11, %cst_8 [1] : vector<2x128x128xf32> to vector<2x128xf32>
    %14 = arith.addf %12, %13 : vector<2x128xf32>
    %c0_9 = arith.constant 0 : index
    %c0_10 = arith.constant 0 : index
    %15 = vector.load %arg6[%c0_9, %c0_10] : memref<2x128xf32, #tpu.memory_space<vmem>>, vector<2x128xf32>
    tpu.vector_store %arg6[%c0_9, %c0_10], %14 {strides = array<i32>} : memref<2x128xf32, #tpu.memory_space<vmem>>, vector<2x128xf32>,
    %c0_11 = arith.constant 0 : index
    %c0_12 = arith.constant 0 : index
    %16 = vector.load %arg8[%c0_11, %c0_12] : memref<2x1xf32, #tpu.memory_space<vmem>>, vector<2x1xf32>
    %cst_13 = arith.constant dense<0.000000e+00> : vector<2xf32>
    %17 = vector.multi_reduction <add>, %4, %cst_13 [1] : vector<2x128xf32> to vector<2xf32>
    %18 = vector.shape_cast %17 : vector<2xf32> to vector<2x1xf32>
    %19 = arith.addf %16, %18 : vector<2x1xf32>
    %c0_14 = arith.constant 0 : index
    %c0_15 = arith.constant 0 : index
    %20 = vector.load %arg8[%c0_14, %c0_15] : memref<2x1xf32, #tpu.memory_space<vmem>>, vector<2x1xf32>
    tpu.vector_store %arg8[%c0_14, %c0_15], %19 {strides = array<i32>} : memref<2x1xf32, #tpu.memory_space<vmem>>, vector<2x1xf32>,
    %c0_16 = arith.constant 0 : index
    %c0_17 = arith.constant 0 : index
    %21 = vector.load %arg7[%c0_16, %c0_17] : memref<2x128xf32, #tpu.memory_space<vmem>>, vector<2x128xf32>
    %22 = vector.shape_cast %8 : vector<2x128xf32> to vector<2x128x1xf32>
    %23 = vector.broadcast %22 : vector<2x128x1xf32> to vector<2x128x128xf32>
    %24 = arith.addf %11, %23 : vector<2x128x128xf32>
    %cst_18 = arith.constant dense<0xFF800000> : vector<2x128xf32>
    %25 = vector.multi_reduction <maximumf>, %24, %cst_18 [1] : vector<2x128x128xf32> to vector<2x128xf32>
    %26 = arith.maximumf %21, %25 : vector<2x128xf32>
    %c0_19 = arith.constant 0 : index
    %c0_20 = arith.constant 0 : index
    %27 = vector.load %arg7[%c0_19, %c0_20] : memref<2x128xf32, #tpu.memory_space<vmem>>, vector<2x128xf32>
    tpu.vector_store %arg7[%c0_19, %c0_20], %26 {strides = array<i32>} : memref<2x128xf32, #tpu.memory_space<vmem>>, vector<2x128xf32>,
    %c0_i32_21 = arith.constant 0 : i32
    %28 = arith.cmpi eq, %arg1, %c0_i32_21 : i32
    %29 = arith.extui %28 : i1 to i32
    %c0_i32_22 = arith.constant 0 : i32
    %30 = arith.cmpi ne, %29, %c0_i32_22 : i32
    scf.if %30 {
      %c0_23 = arith.constant 0 : index
      %c0_24 = arith.constant 0 : index
      %31 = vector.load %arg7[%c0_23, %c0_24] : memref<2x128xf32, #tpu.memory_space<vmem>>, vector<2x128xf32>
      %c0_25 = arith.constant 0 : index
      %c0_26 = arith.constant 0 : index
      %32 = vector.load %arg4[%c0_25, %c0_26] : memref<2x128xf32, #tpu.memory_space<vmem>>, vector<2x128xf32>
      tpu.vector_store %arg4[%c0_25, %c0_26], %31 {strides = array<i32>} : memref<2x128xf32, #tpu.memory_space<vmem>>, vector<2x128xf32>,
      %c0_27 = arith.constant 0 : index
      %c0_28 = arith.constant 0 : index
      %33 = vector.load %arg6[%c0_27, %c0_28] : memref<2x128xf32, #tpu.memory_space<vmem>>, vector<2x128xf32>
      %c0_29 = arith.constant 0 : index
      %c0_30 = arith.constant 0 : index
      %34 = vector.load %arg8[%c0_29, %c0_30] : memref<2x1xf32, #tpu.memory_space<vmem>>, vector<2x1xf32>
      %35 = vector.broadcast %34 : vector<2x1xf32> to vector<2x128xf32>
      %36 = arith.divf %33, %35 : vector<2x128xf32>
      %c0_31 = arith.constant 0 : index
      %c0_32 = arith.constant 0 : index
      %37 = vector.load %arg5[%c0_31, %c0_32] : memref<2x128xf32, #tpu.memory_space<vmem>>, vector<2x128xf32>
      tpu.vector_store %arg5[%c0_31, %c0_32], %36 {strides = array<i32>} : memref<2x128xf32, #tpu.memory_space<vmem>>, vector<2x128xf32>,
    } else {
    }
    return
  }
  func.func @transform_0(%arg0: i32, %arg1: i32) -> (i32, i32, i32) {
    %c0_i32 = arith.constant 0 : i32
    %c0_i32_0 = arith.constant 0 : i32
    return %arg0, %arg1, %c0_i32 : i32, i32, i32
  }
  func.func @transform_1(%arg0: i32, %arg1: i32) -> (i32, i32) {
    %c0_i32 = arith.constant 0 : i32
    return %arg0, %arg1 : i32, i32
  }
  func.func @transform_2(%arg0: i32, %arg1: i32) -> (i32, i32) {
    %c0_i32 = arith.constant 0 : i32
    %c0_i32_0 = arith.constant 0 : i32
    return %arg0, %c0_i32 : i32, i32
  }
  func.func @transform_3(%arg0: i32, %arg1: i32) -> (i32, i32) {
    %c0_i32 = arith.constant 0 : i32
    %c0_i32_0 = arith.constant 0 : i32
    return %arg0, %c0_i32 : i32, i32
  }
}

</mosaic_0001>

<llo_original>
// kernel: tpu_custom_call.1
$region0: #{tpu_custom_call.1}
  #allocation0 [shape = 'u32[]', space=smem, size = 0x4, offset = 0x4, fixed_abs, tag = 'smem constant byte address 0x4 - core index']
  #allocation1 [shape = 'u32[72,128]{1,0:T(1,128)}', space=vmem, size = 0x9000, scoped, tag = 'internal scratch']
  #allocation2 [shape = 'f32[2,128]{1,0:T(2,128)}', space=vmem, size = 0x400, scoped, tag = 'scratch operand']
  #allocation3 [shape = 'f32[2,128]{1,0:T(2,128)}', space=vmem, size = 0x400, scoped, tag = 'scratch operand']
  #allocation4 [shape = 'f32[2,1]{1,0:T(2,128)}', space=vmem, size = 0x400, scoped, tag = 'scratch operand']
  %s0 = inlined_call_operand.hbm [shape: f32[2,128,128], index: 0, kind: input, shape index: {}]
  %s1 = inlined_call_operand.hbm [shape: f32[2,128], index: 1, kind: input, shape index: {}]
  %s2 = inlined_call_operand.hbm [shape: f32[2,128], index: 2, kind: output, shape index: {0}]
  %s3 = inlined_call_operand.hbm [shape: f32[2,128], index: 3, kind: output, shape index: {1}]
  %4 = xla_tuple %s2, %s3
  %s5 = sld [smem:[#allocation0]]
  $region42: #{tpu_custom_call.1} parent=0
    _
  %s7 = ssub.s32 1, %s5
  %s8 = scalar_select 0, %s7, %s5
  $region1: #{tpu_custom_call.1} parent=0
    #allocation5 [shape = 'u8[131072]{0}', space=vmem, size = 0x20000, scoped, tag = 'input window, operand 0, single buffered']
    #allocation6 [shape = 's32[1]{0}', space=sflag, size = 0x4, scoped, tag = 'scoped memory for tpu_custom_call.1']
    #allocation7 [shape = 's32[1]{0}', space=sflag, size = 0x4, scoped, tag = 'scoped memory for tpu_custom_call.1']
    #allocation8 [shape = 'u8[1024]{0}', space=vmem, size = 0x400, scoped, tag = 'input window, operand 1, single buffered']
    #allocation9 [shape = 's32[1]{0}', space=sflag, size = 0x4, scoped, tag = 'scoped memory for tpu_custom_call.1']
    #allocation10 [shape = 'u8[1024]{0}', space=vmem, size = 0x400, scoped, tag = 'output window, operand 0, single buffered']
    #allocation11 [shape = 'u8[1024]{0}', space=vmem, size = 0x400, scoped, tag = 'output window, operand 1, single buffered']
    #allocation12 [shape = 's32[1]{0}', space=sflag, size = 0x4, scoped, tag = 'scoped memory for tpu_custom_call.1']
    %9 = vsyncpa [#allocation6], 0
    %10 = vsyncpa [#allocation9], 0
    %11 = vsyncpa [#allocation7], 0
    %12 = vsyncpa [#allocation12], 0
    // Predicated region
    $region2: #{tpu_custom_call.1} parent=1 // pred_check
      _
    $region3: #{tpu_custom_call.1} parent=1 // pred_check_branch
      %14 = sbr.rel (0) target = $region5
    $region4: #{tpu_custom_call.1} parent=1 // pred_region
      %16 = vsyncadd [#allocation6], 0
      %s17 = sshll.u32 %s0, 4
      %s18 = int_to_ptr.hbm [resolvable:$true] %s17
      %s19 = sshll.u32 [#allocation5], 4
      %s20 = int_to_ptr.vmem [resolvable:$true] %s19
      %25 = dma.hbm_to_vmem [thread:$0]  %s18, 4096, %s20, [#allocation6], 128, 128, 8
    $region5: #{tpu_custom_call.1} parent=1 // pred_fallthru
      _
    // Predicated region
    $region6: #{tpu_custom_call.1} parent=1 // pred_check
      _
    $region7: #{tpu_custom_call.1} parent=1 // pred_check_branch
      %27 = sbr.rel (0) target = $region9
    $region8: #{tpu_custom_call.1} parent=1 // pred_region
      %29 = vsyncadd [#allocation9], 0
      %s31 = sshll.u32 %s1, 4
      %s32 = int_to_ptr.hbm [resolvable:$true] %s31
      %s33 = sshll.u32 [#allocation8], 4
      %s34 = int_to_ptr.vmem [resolvable:$true] %s33
      %36 = dma.hbm_to_vmem [thread:$0]  %s32, 32, %s34, [#allocation9]
    $region9: #{tpu_custom_call.1} parent=1 // pred_fallthru
      _
    // Predicated region
    $region10: #{tpu_custom_call.1} parent=1 // pred_check
      _
    $region11: #{tpu_custom_call.1} parent=1 // pred_check_branch
      %38 = sbr.rel (0) target = $region13
    $region12: #{tpu_custom_call.1} parent=1 // pred_region
      %40 = dma.done [#allocation6], 4096
    $region13: #{tpu_custom_call.1} parent=1 // pred_fallthru
      _
    // Predicated region
    $region14: #{tpu_custom_call.1} parent=1 // pred_check
      _
    $region15: #{tpu_custom_call.1} parent=1 // pred_check_branch
      %42 = sbr.rel (0) target = $region17
    $region16: #{tpu_custom_call.1} parent=1 // pred_region
      %44 = dma.done [#allocation9], 32
    $region17: #{tpu_custom_call.1} parent=1 // pred_fallthru
      _
    %p45 = scmp.eq.s32.totalorder 0, 0
    // Predicated region
    $region18: #{tpu_custom_call.1} parent=1 // pred_check
      %p46 = pneg %p45
    $region19: #{tpu_custom_call.1} parent=1 // pred_check_branch
      %48 = sbr.rel (%p46) target = $region21
    $region20: #{tpu_custom_call.1} parent=1 // pred_region
      %49 = vst [vmem:[#allocation2] sm:$0x3] 0.0
      %50 = vst [vmem:[#allocation3] sm:$0x3] -inf
      %vm51 = vcmask 1024
      %52 = vst.msk [vmem:[#allocation4] sm:$0x3] %vm51, 0.0
    $region21: #{tpu_custom_call.1} parent=1 // pred_fallthru
      _
    %v53 = vld [vmem:[#allocation5] sm:$0xff]
    %v54 = vld [vmem:[#allocation5 + $0x8] sm:$0xff]
    %v55 = vld [vmem:[#allocation5 + $0x10] sm:$0xff]
    %v56 = vld [vmem:[#allocation5 + $0x18] sm:$0xff]
    %v57 = vld [vmem:[#allocation5 + $0x20] sm:$0xff]
    %v58 = vld [vmem:[#allocation5 + $0x28] sm:$0xff]
    %v59 = vld [vmem:[#allocation5 + $0x30] sm:$0xff]
    %v60 = vld [vmem:[#allocation5 + $0x38] sm:$0xff]
    %v61 = vld [vmem:[#allocation5 + $0x40] sm:$0xff]
    %v62 = vld [vmem:[#allocation5 + $0x48] sm:$0xff]
    %v63 = vld [vmem:[#allocation5 + $0x50] sm:$0xff]
    %v64 = vld [vmem:[#allocation5 + $0x58] sm:$0xff]
    %v65 = vld [vmem:[#allocation5 + $0x60] sm:$0xff]
    %v66 = vld [vmem:[#allocation5 + $0x68] sm:$0xff]
    %v67 = vld [vmem:[#allocation5 + $0x70] sm:$0xff]
    %v68 = vld [vmem:[#allocation5 + $0x78] sm:$0xff]
    %v69 = vld [vmem:[#allocation5 + $0x80] sm:$0xff]
    %v70 = vld [vmem:[#allocation5 + $0x88] sm:$0xff]
    %v71 = vld [vmem:[#allocation5 + $0x90] sm:$0xff]
    %v72 = vld [vmem:[#allocation5 + $0x98] sm:$0xff]
    %v73 = vld [vmem:[#allocation5 + $0xa0] sm:$0xff]
    %v74 = vld [vmem:[#allocation5 + $0xa8] sm:$0xff]
    %v75 = vld [vmem:[#allocation5 + $0xb0] sm:$0xff]
    %v76 = vld [vmem:[#allocation5 + $0xb8] sm:$0xff]
    %v77 = vld [vmem:[#allocation5 + $0xc0] sm:$0xff]
    %v78 = vld [vmem:[#allocation5 + $0xc8] sm:$0xff]
    %v79 = vld [vmem:[#allocation5 + $0xd0] sm:$0xff]
    %v80 = vld [vmem:[#allocation5 + $0xd8] sm:$0xff]
    %v81 = vld [vmem:[#allocation5 + $0xe0] sm:$0xff]
    %v82 = vld [vmem:[#allocation5 + $0xe8] sm:$0xff]
    %v83 = vld [vmem:[#allocation5 + $0xf0] sm:$0xff]
    %v84 = vld [vmem:[#allocation5 + $0xf8] sm:$0xff]
    %v85 = vld [vmem:[#allocation8] sm:$0x3]
    %v86 = vsub.f32 %v85, 1.0
    %v87 = vmul.f32 %v86, 10000.0
    %v88 = vperm.slane %v85, 0
    %v89 = vlaneseq
    %v90 = vshrl.u32 %v89, 7
    %92 = vset.pattern.permute.xlu0 %v90
    %93 = vperm.xlu0 %92, %v88
    %v94 = vpop.permute.xlu0 %93
    %v95 = vlaneseq
    %v96 = vshrl.u32 %v95, 7
    %v97 = vadd.s32 %v96, 8
    %98 = vset.pattern.permute.xlu0 %v97
    %99 = vperm.xlu0 %98, %v88
    %v100 = vpop.permute.xlu0 %99
    %v101 = vlaneseq
    %v102 = vshrl.u32 %v101, 7
    %v103 = vadd.s32 %v102, 16
    %104 = vset.pattern.permute.xlu0 %v103
    %105 = vperm.xlu0 %104, %v88
    %v106 = vpop.permute.xlu0 %105
    %v107 = vlaneseq
    %v108 = vshrl.u32 %v107, 7
    %v109 = vadd.s32 %v108, 24
    %110 = vset.pattern.permute.xlu0 %v109
    %111 = vperm.xlu0 %110, %v88
    %v112 = vpop.permute.xlu0 %111
    %v113 = vlaneseq
    %v114 = vshrl.u32 %v113, 7
    %v115 = vadd.s32 %v114, 32
    %116 = vset.pattern.permute.xlu0 %v115
    %117 = vperm.xlu0 %116, %v88
    %v118 = vpop.permute.xlu0 %117
    %v119 = vlaneseq
    %v120 = vshrl.u32 %v119, 7
    %v121 = vadd.s32 %v120, 40
    %122 = vset.pattern.permute.xlu0 %v121
    %123 = vperm.xlu0 %122, %v88
    %v124 = vpop.permute.xlu0 %123
    %v125 = vlaneseq
    %v126 = vshrl.u32 %v125, 7
    %v127 = vadd.s32 %v126, 48
    %128 = vset.pattern.permute.xlu0 %v127
    %129 = vperm.xlu0 %128, %v88
    %v130 = vpop.permute.xlu0 %129
    %v131 = vlaneseq
    %v132 = vshrl.u32 %v131, 7
    %v133 = vadd.s32 %v132, 56
    %134 = vset.pattern.permute.xlu0 %v133
    %135 = vperm.xlu0 %134, %v88
    %v136 = vpop.permute.xlu0 %135
    %v137 = vlaneseq
    %v138 = vshrl.u32 %v137, 7
    %v139 = vadd.s32 %v138, 64
    %140 = vset.pattern.permute.xlu0 %v139
    %141 = vperm.xlu0 %140, %v88
    %v142 = vpop.permute.xlu0 %141
    %v143 = vlaneseq
    %v144 = vshrl.u32 %v143, 7
    %v145 = vadd.s32 %v144, 72
    %146 = vset.pattern.permute.xlu0 %v145
    %147 = vperm.xlu0 %146, %v88
    %v148 = vpop.permute.xlu0 %147
    %v149 = vlaneseq
    %v150 = vshrl.u32 %v149, 7
    %v151 = vadd.s32 %v150, 80
    %152 = vset.pattern.permute.xlu0 %v151
    %153 = vperm.xlu0 %152, %v88
    %v154 = vpop.permute.xlu0 %153
    %v155 = vlaneseq
    %v156 = vshrl.u32 %v155, 7
    %v157 = vadd.s32 %v156, 88
    %158 = vset.pattern.permute.xlu0 %v157
    %159 = vperm.xlu0 %158, %v88
    %v160 = vpop.permute.xlu0 %159
    %v161 = vlaneseq
    %v162 = vshrl.u32 %v161, 7
    %v163 = vadd.s32 %v162, 96
    %164 = vset.pattern.permute.xlu0 %v163
    %165 = vperm.xlu0 %164, %v88
    %v166 = vpop.permute.xlu0 %165
    %v167 = vlaneseq
    %v168 = vshrl.u32 %v167, 7
    %v169 = vadd.s32 %v168, 104
    %170 = vset.pattern.permute.xlu0 %v169
    %171 = vperm.xlu0 %170, %v88
    %v172 = vpop.permute.xlu0 %171
    %v173 = vlaneseq
    %v174 = vshrl.u32 %v173, 7
    %v175 = vadd.s32 %v174, 112
    %176 = vset.pattern.permute.xlu0 %v175
    %177 = vperm.xlu0 %176, %v88
    %v178 = vpop.permute.xlu0 %177
    %v179 = vlaneseq
    %v180 = vshrl.u32 %v179, 7
    %v181 = vadd.s32 %v180, 120
    %182 = vset.pattern.permute.xlu0 %v181
    %183 = vperm.xlu0 %182, %v88
    %v184 = vpop.permute.xlu0 %183
    %v185 = vperm.slane %v85, 1
    %v186 = vlaneseq
    %v187 = vshrl.u32 %v186, 7
    %189 = vset.pattern.permute.xlu0 %v187
    %190 = vperm.xlu0 %189, %v185
    %v191 = vpop.permute.xlu0 %190
    %v192 = vlaneseq
    %v193 = vshrl.u32 %v192, 7
    %v194 = vadd.s32 %v193, 8
    %195 = vset.pattern.permute.xlu0 %v194
    %196 = vperm.xlu0 %195, %v185
    %v197 = vpop.permute.xlu0 %196
    %v198 = vlaneseq
    %v199 = vshrl.u32 %v198, 7
    %v200 = vadd.s32 %v199, 16
    %201 = vset.pattern.permute.xlu0 %v200
    %202 = vperm.xlu0 %201, %v185
    %v203 = vpop.permute.xlu0 %202
    %v204 = vlaneseq
    %v205 = vshrl.u32 %v204, 7
    %v206 = vadd.s32 %v205, 24
    %207 = vset.pattern.permute.xlu0 %v206
    %208 = vperm.xlu0 %207, %v185
    %v209 = vpop.permute.xlu0 %208
    %v210 = vlaneseq
    %v211 = vshrl.u32 %v210, 7
    %v212 = vadd.s32 %v211, 32
    %213 = vset.pattern.permute.xlu0 %v212
    %214 = vperm.xlu0 %213, %v185
    %v215 = vpop.permute.xlu0 %214
    %v216 = vlaneseq
    %v217 = vshrl.u32 %v216, 7
    %v218 = vadd.s32 %v217, 40
    %219 = vset.pattern.permute.xlu0 %v218
    %220 = vperm.xlu0 %219, %v185
    %v221 = vpop.permute.xlu0 %220
    %v222 = vlaneseq
    %v223 = vshrl.u32 %v222, 7
    %v224 = vadd.s32 %v223, 48
    %225 = vset.pattern.permute.xlu0 %v224
    %226 = vperm.xlu0 %225, %v185
    %v227 = vpop.permute.xlu0 %226
    %v228 = vlaneseq
    %v229 = vshrl.u32 %v228, 7
    %v230 = vadd.s32 %v229, 56
    %231 = vset.pattern.permute.xlu0 %v230
    %232 = vperm.xlu0 %231, %v185
    %v233 = vpop.permute.xlu0 %232
    %v234 = vlaneseq
    %v235 = vshrl.u32 %v234, 7
    %v236 = vadd.s32 %v235, 64
    %237 = vset.pattern.permute.xlu0 %v236
    %238 = vperm.xlu0 %237, %v185
    %v239 = vpop.permute.xlu0 %238
    %v240 = vlaneseq
    %v241 = vshrl.u32 %v240, 7
    %v242 = vadd.s32 %v241, 72
    %243 = vset.pattern.permute.xlu0 %v242
    %244 = vperm.xlu0 %243, %v185
    %v245 = vpop.permute.xlu0 %244
    %v246 = vlaneseq
    %v247 = vshrl.u32 %v246, 7
    %v248 = vadd.s32 %v247, 80
    %249 = vset.pattern.permute.xlu0 %v248
    %250 = vperm.xlu0 %249, %v185
    %v251 = vpop.permute.xlu0 %250
    %v252 = vlaneseq
    %v253 = vshrl.u32 %v252, 7
    %v254 = vadd.s32 %v253, 88
    %255 = vset.pattern.permute.xlu0 %v254
    %256 = vperm.xlu0 %255, %v185
    %v257 = vpop.permute.xlu0 %256
    %v258 = vlaneseq
    %v259 = vshrl.u32 %v258, 7
    %v260 = vadd.s32 %v259, 96
    %261 = vset.pattern.permute.xlu0 %v260
    %262 = vperm.xlu0 %261, %v185
    %v263 = vpop.permute.xlu0 %262
    %v264 = vlaneseq
    %v265 = vshrl.u32 %v264, 7
    %v266 = vadd.s32 %v265, 104
    %267 = vset.pattern.permute.xlu0 %v266
    %268 = vperm.xlu0 %267, %v185
    %v269 = vpop.permute.xlu0 %268
    %v270 = vlaneseq
    %v271 = vshrl.u32 %v270, 7
    %v272 = vadd.s32 %v271, 112
    %273 = vset.pattern.permute.xlu0 %v272
    %274 = vperm.xlu0 %273, %v185
    %v275 = vpop.permute.xlu0 %274
    %v276 = vlaneseq
    %v277 = vshrl.u32 %v276, 7
    %v278 = vadd.s32 %v277, 120
    %279 = vset.pattern.permute.xlu0 %v278
    %280 = vperm.xlu0 %279, %v185
    %v281 = vpop.permute.xlu0 %280
    %v282 = vmul.f32 %v53, %v94
    %v283 = vmul.f32 %v54, %v100
    %v284 = vmul.f32 %v55, %v106
    %v285 = vmul.f32 %v56, %v112
    %v286 = vmul.f32 %v57, %v118
    %v287 = vmul.f32 %v58, %v124
    %v288 = vmul.f32 %v59, %v130
    %v289 = vmul.f32 %v60, %v136
    %v290 = vmul.f32 %v61, %v142
    %v291 = vmul.f32 %v62, %v148
    %v292 = vmul.f32 %v63, %v154
    %v293 = vmul.f32 %v64, %v160
    %v294 = vmul.f32 %v65, %v166
    %v295 = vmul.f32 %v66, %v172
    %v296 = vmul.f32 %v67, %v178
    %v297 = vmul.f32 %v68, %v184
    %v298 = vmul.f32 %v69, %v191
    %v299 = vmul.f32 %v70, %v197
    %v300 = vmul.f32 %v71, %v203
    %v301 = vmul.f32 %v72, %v209
    %v302 = vmul.f32 %v73, %v215
    %v303 = vmul.f32 %v74, %v221
    %v304 = vmul.f32 %v75, %v227
    %v305 = vmul.f32 %v76, %v233
    %v306 = vmul.f32 %v77, %v239
    %v307 = vmul.f32 %v78, %v245
    %v308 = vmul.f32 %v79, %v251
    %v309 = vmul.f32 %v80, %v257
    %v310 = vmul.f32 %v81, %v263
    %v311 = vmul.f32 %v82, %v269
    %v312 = vmul.f32 %v83, %v275
    %v313 = vmul.f32 %v84, %v281
    %v314 = vld [vmem:[#allocation2] sm:$0x3]
    %v315 = vadd.f32 %v282, %v283
    %v316 = vadd.f32 %v315, %v284
    %v317 = vadd.f32 %v316, %v285
    %v318 = vadd.f32 %v317, %v286
    %v319 = vadd.f32 %v318, %v287
    %v320 = vadd.f32 %v319, %v288
    %v321 = vadd.f32 %v320, %v289
    %v322 = vadd.f32 %v321, %v290
    %v323 = vadd.f32 %v322, %v291
    %v324 = vadd.f32 %v323, %v292
    %v325 = vadd.f32 %v324, %v293
    %v326 = vadd.f32 %v325, %v294
    %v327 = vadd.f32 %v326, %v295
    %v328 = vadd.f32 %v327, %v296
    %v329 = vadd.f32 %v328, %v297
    %v330 = vrot.slane %v329, 4
    %v331 = vadd.f32 %v329, %v330
    %v332 = vrot.slane %v331, 2
    %v333 = vadd.f32 %v331, %v332
    %v334 = vrot.slane %v333, 1
    %v335 = vadd.f32 %v333, %v334
    %v336 = vadd.f32 %v298, %v299
    %v337 = vadd.f32 %v336, %v300
    %v338 = vadd.f32 %v337, %v301
    %v339 = vadd.f32 %v338, %v302
    %v340 = vadd.f32 %v339, %v303
    %v341 = vadd.f32 %v340, %v304
    %v342 = vadd.f32 %v341, %v305
    %v343 = vadd.f32 %v342, %v306
    %v344 = vadd.f32 %v343, %v307
    %v345 = vadd.f32 %v344, %v308
    %v346 = vadd.f32 %v345, %v309
    %v347 = vadd.f32 %v346, %v310
    %v348 = vadd.f32 %v347, %v311
    %v349 = vadd.f32 %v348, %v312
    %v350 = vadd.f32 %v349, %v313
    %v351 = vrot.slane %v350, 4
    %v352 = vadd.f32 %v350, %v351
    %v353 = vrot.slane %v352, 2
    %v354 = vadd.f32 %v352, %v353
    %v355 = vrot.slane %v354, 1
    %v356 = vadd.f32 %v354, %v355
    %vm359 = vcmask 1041409
    %v360 = vsel %vm359, %v356, %v335
    %v362 = vadd.f32 %v314, %v360
    %363 = vst [vmem:[#allocation2] sm:$0x3] %v362
    %v364 = vld [vmem:[#allocation4] sm:$0x3]
    %vm365 = vcmask 1041408
    %v366 = vsel %vm365, %v85, 0.0
    %367 = vadd.xlane.f32.xlu0 %v366
    %v368 = vpop.xlane.xlu0 %367
    %v369 = vadd.f32 %v364, %v368
    %vm370 = vcmask 1024
    %371 = vst.msk [vmem:[#allocation4] sm:$0x3] %vm370, %v369
    %v372 = vld [vmem:[#allocation3] sm:$0x3]
    %v373 = vperm.slane %v87, 0
    %v374 = vlaneseq
    %v375 = vshrl.u32 %v374, 7
    %377 = vset.pattern.permute.xlu0 %v375
    %378 = vperm.xlu0 %377, %v373
    %v379 = vpop.permute.xlu0 %378
    %v380 = vlaneseq
    %v381 = vshrl.u32 %v380, 7
    %v382 = vadd.s32 %v381, 8
    %383 = vset.pattern.permute.xlu0 %v382
    %384 = vperm.xlu0 %383, %v373
    %v385 = vpop.permute.xlu0 %384
    %v386 = vlaneseq
    %v387 = vshrl.u32 %v386, 7
    %v388 = vadd.s32 %v387, 16
    %389 = vset.pattern.permute.xlu0 %v388
    %390 = vperm.xlu0 %389, %v373
    %v391 = vpop.permute.xlu0 %390
    %v392 = vlaneseq
    %v393 = vshrl.u32 %v392, 7
    %v394 = vadd.s32 %v393, 24
    %395 = vset.pattern.permute.xlu0 %v394
    %396 = vperm.xlu0 %395, %v373
    %v397 = vpop.permute.xlu0 %396
    %v398 = vlaneseq
    %v399 = vshrl.u32 %v398, 7
    %v400 = vadd.s32 %v399, 32
    %401 = vset.pattern.permute.xlu0 %v400
    %402 = vperm.xlu0 %401, %v373
    %v403 = vpop.permute.xlu0 %402
    %v404 = vlaneseq
    %v405 = vshrl.u32 %v404, 7
    %v406 = vadd.s32 %v405, 40
    %407 = vset.pattern.permute.xlu0 %v406
    %408 = vperm.xlu0 %407, %v373
    %v409 = vpop.permute.xlu0 %408
    %v410 = vlaneseq
    %v411 = vshrl.u32 %v410, 7
    %v412 = vadd.s32 %v411, 48
    %413 = vset.pattern.permute.xlu0 %v412
    %414 = vperm.xlu0 %413, %v373
    %v415 = vpop.permute.xlu0 %414
    %v416 = vlaneseq
    %v417 = vshrl.u32 %v416, 7
    %v418 = vadd.s32 %v417, 56
    %419 = vset.pattern.permute.xlu0 %v418
    %420 = vperm.xlu0 %419, %v373
    %v421 = vpop.permute.xlu0 %420
    %v422 = vlaneseq
    %v423 = vshrl.u32 %v422, 7
    %v424 = vadd.s32 %v423, 64
    %425 = vset.pattern.permute.xlu0 %v424
    %426 = vperm.xlu0 %425, %v373
    %v427 = vpop.permute.xlu0 %426
    %v428 = vlaneseq
    %v429 = vshrl.u32 %v428, 7
    %v430 = vadd.s32 %v429, 72
    %431 = vset.pattern.permute.xlu0 %v430
    %432 = vperm.xlu0 %431, %v373
    %v433 = vpop.permute.xlu0 %432
    %v434 = vlaneseq
    %v435 = vshrl.u32 %v434, 7
    %v436 = vadd.s32 %v435, 80
    %437 = vset.pattern.permute.xlu0 %v436
    %438 = vperm.xlu0 %437, %v373
    %v439 = vpop.permute.xlu0 %438
    %v440 = vlaneseq
    %v441 = vshrl.u32 %v440, 7
    %v442 = vadd.s32 %v441, 88
    %443 = vset.pattern.permute.xlu0 %v442
    %444 = vperm.xlu0 %443, %v373
    %v445 = vpop.permute.xlu0 %444
    %v446 = vlaneseq
    %v447 = vshrl.u32 %v446, 7
    %v448 = vadd.s32 %v447, 96
    %449 = vset.pattern.permute.xlu0 %v448
    %450 = vperm.xlu0 %449, %v373
    %v451 = vpop.permute.xlu0 %450
    %v452 = vlaneseq
    %v453 = vshrl.u32 %v452, 7
    %v454 = vadd.s32 %v453, 104
    %455 = vset.pattern.permute.xlu0 %v454
    %456 = vperm.xlu0 %455, %v373
    %v457 = vpop.permute.xlu0 %456
    %v458 = vlaneseq
    %v459 = vshrl.u32 %v458, 7
    %v460 = vadd.s32 %v459, 112
    %461 = vset.pattern.permute.xlu0 %v460
    %462 = vperm.xlu0 %461, %v373
    %v463 = vpop.permute.xlu0 %462
    %v464 = vlaneseq
    %v465 = vshrl.u32 %v464, 7
    %v466 = vadd.s32 %v465, 120
    %467 = vset.pattern.permute.xlu0 %v466
    %468 = vperm.xlu0 %467, %v373
    %v469 = vpop.permute.xlu0 %468
    %v470 = vperm.slane %v87, 1
    %v471 = vlaneseq
    %v472 = vshrl.u32 %v471, 7
    %474 = vset.pattern.permute.xlu0 %v472
    %475 = vperm.xlu0 %474, %v470
    %v476 = vpop.permute.xlu0 %475
    %v477 = vlaneseq
    %v478 = vshrl.u32 %v477, 7
    %v479 = vadd.s32 %v478, 8
    %480 = vset.pattern.permute.xlu0 %v479
    %481 = vperm.xlu0 %480, %v470
    %v482 = vpop.permute.xlu0 %481
    %v483 = vlaneseq
    %v484 = vshrl.u32 %v483, 7
    %v485 = vadd.s32 %v484, 16
    %486 = vset.pattern.permute.xlu0 %v485
    %487 = vperm.xlu0 %486, %v470
    %v488 = vpop.permute.xlu0 %487
    %v489 = vlaneseq
    %v490 = vshrl.u32 %v489, 7
    %v491 = vadd.s32 %v490, 24
    %492 = vset.pattern.permute.xlu0 %v491
    %493 = vperm.xlu0 %492, %v470
    %v494 = vpop.permute.xlu0 %493
    %v495 = vlaneseq
    %v496 = vshrl.u32 %v495, 7
    %v497 = vadd.s32 %v496, 32
    %498 = vset.pattern.permute.xlu0 %v497
    %499 = vperm.xlu0 %498, %v470
    %v500 = vpop.permute.xlu0 %499
    %v501 = vlaneseq
    %v502 = vshrl.u32 %v501, 7
    %v503 = vadd.s32 %v502, 40
    %504 = vset.pattern.permute.xlu0 %v503
    %505 = vperm.xlu0 %504, %v470
    %v506 = vpop.permute.xlu0 %505
    %v507 = vlaneseq
    %v508 = vshrl.u32 %v507, 7
    %v509 = vadd.s32 %v508, 48
    %510 = vset.pattern.permute.xlu0 %v509
    %511 = vperm.xlu0 %510, %v470
    %v512 = vpop.permute.xlu0 %511
    %v513 = vlaneseq
    %v514 = vshrl.u32 %v513, 7
    %v515 = vadd.s32 %v514, 56
    %516 = vset.pattern.permute.xlu0 %v515
    %517 = vperm.xlu0 %516, %v470
    %v518 = vpop.permute.xlu0 %517
    %v519 = vlaneseq
    %v520 = vshrl.u32 %v519, 7
    %v521 = vadd.s32 %v520, 64
    %522 = vset.pattern.permute.xlu0 %v521
    %523 = vperm.xlu0 %522, %v470
    %v524 = vpop.permute.xlu0 %523
    %v525 = vlaneseq
    %v526 = vshrl.u32 %v525, 7
    %v527 = vadd.s32 %v526, 72
    %528 = vset.pattern.permute.xlu0 %v527
    %529 = vperm.xlu0 %528, %v470
    %v530 = vpop.permute.xlu0 %529
    %v531 = vlaneseq
    %v532 = vshrl.u32 %v531, 7
    %v533 = vadd.s32 %v532, 80
    %534 = vset.pattern.permute.xlu0 %v533
    %535 = vperm.xlu0 %534, %v470
    %v536 = vpop.permute.xlu0 %535
    %v537 = vlaneseq
    %v538 = vshrl.u32 %v537, 7
    %v539 = vadd.s32 %v538, 88
    %540 = vset.pattern.permute.xlu0 %v539
    %541 = vperm.xlu0 %540, %v470
    %v542 = vpop.permute.xlu0 %541
    %v543 = vlaneseq
    %v544 = vshrl.u32 %v543, 7
    %v545 = vadd.s32 %v544, 96
    %546 = vset.pattern.permute.xlu0 %v545
    %547 = vperm.xlu0 %546, %v470
    %v548 = vpop.permute.xlu0 %547
    %v549 = vlaneseq
    %v550 = vshrl.u32 %v549, 7
    %v551 = vadd.s32 %v550, 104
    %552 = vset.pattern.permute.xlu0 %v551
    %553 = vperm.xlu0 %552, %v470
    %v554 = vpop.permute.xlu0 %553
    %v555 = vlaneseq
    %v556 = vshrl.u32 %v555, 7
    %v557 = vadd.s32 %v556, 112
    %558 = vset.pattern.permute.xlu0 %v557
    %559 = vperm.xlu0 %558, %v470
    %v560 = vpop.permute.xlu0 %559
    %v561 = vlaneseq
    %v562 = vshrl.u32 %v561, 7
    %v563 = vadd.s32 %v562, 120
    %564 = vset.pattern.permute.xlu0 %v563
    %565 = vperm.xlu0 %564, %v470
    %v566 = vpop.permute.xlu0 %565
    %v567 = vadd.f32 %v282, %v379
    %v568 = vadd.f32 %v283, %v385
    %v569 = vadd.f32 %v284, %v391
    %v570 = vadd.f32 %v285, %v397
    %v571 = vadd.f32 %v286, %v403
    %v572 = vadd.f32 %v287, %v409
    %v573 = vadd.f32 %v288, %v415
    %v574 = vadd.f32 %v289, %v421
    %v575 = vadd.f32 %v290, %v427
    %v576 = vadd.f32 %v291, %v433
    %v577 = vadd.f32 %v292, %v439
    %v578 = vadd.f32 %v293, %v445
    %v579 = vadd.f32 %v294, %v451
    %v580 = vadd.f32 %v295, %v457
    %v581 = vadd.f32 %v296, %v463
    %v582 = vadd.f32 %v297, %v469
    %v583 = vadd.f32 %v298, %v476
    %v584 = vadd.f32 %v299, %v482
    %v585 = vadd.f32 %v300, %v488
    %v586 = vadd.f32 %v301, %v494
    %v587 = vadd.f32 %v302, %v500
    %v588 = vadd.f32 %v303, %v506
    %v589 = vadd.f32 %v304, %v512
    %v590 = vadd.f32 %v305, %v518
    %v591 = vadd.f32 %v306, %v524
    %v592 = vadd.f32 %v307, %v530
    %v593 = vadd.f32 %v308, %v536
    %v594 = vadd.f32 %v309, %v542
    %v595 = vadd.f32 %v310, %v548
    %v596 = vadd.f32 %v311, %v554
    %v597 = vadd.f32 %v312, %v560
    %v598 = vadd.f32 %v313, %v566
    %v599 = vmax.f32 %v567, %v569
    %v600 = vmax.f32 %v568, %v570
    %v601 = vmax.f32 %v599, %v571
    %v602 = vmax.f32 %v600, %v572
    %v603 = vmax.f32 %v601, %v573
    %v604 = vmax.f32 %v602, %v574
    %v605 = vmax.f32 %v603, %v575
    %v606 = vmax.f32 %v604, %v576
    %v607 = vmax.f32 %v605, %v577
    %v608 = vmax.f32 %v606, %v578
    %v609 = vmax.f32 %v607, %v579
    %v610 = vmax.f32 %v608, %v580
    %v611 = vmax.f32 %v609, %v581
    %v612 = vmax.f32 %v610, %v582
    %v613 = vmax.f32 %v611, %v612
    %v614 = vrot.slane %v613, 4
    %v615 = vmax.f32 %v613, %v614
    %v616 = vrot.slane %v615, 2
    %v617 = vmax.f32 %v615, %v616
    %v618 = vrot.slane %v617, 1
    %v619 = vmax.f32 %v617, %v618
    %v620 = vmax.f32 %v583, %v585
    %v621 = vmax.f32 %v584, %v586
    %v622 = vmax.f32 %v620, %v587
    %v623 = vmax.f32 %v621, %v588
    %v624 = vmax.f32 %v622, %v589
    %v625 = vmax.f32 %v623, %v590
    %v626 = vmax.f32 %v624, %v591
    %v627 = vmax.f32 %v625, %v592
    %v628 = vmax.f32 %v626, %v593
    %v629 = vmax.f32 %v627, %v594
    %v630 = vmax.f32 %v628, %v595
    %v631 = vmax.f32 %v629, %v596
    %v632 = vmax.f32 %v630, %v597
    %v633 = vmax.f32 %v631, %v598
    %v634 = vmax.f32 %v632, %v633
    %v635 = vrot.slane %v634, 4
    %v636 = vmax.f32 %v634, %v635
    %v637 = vrot.slane %v636, 2
    %v638 = vmax.f32 %v636, %v637
    %v639 = vrot.slane %v638, 1
    %v640 = vmax.f32 %v638, %v639
    %v643 = vsel %vm359, %v640, %v619
    %v645 = vmax.f32 %v372, %v643
    %646 = vst [vmem:[#allocation3] sm:$0x3] %v645
    // Predicated region
    $region22: #{tpu_custom_call.1} parent=1 // pred_check
      %p647 = pneg %p45
    $region23: #{tpu_custom_call.1} parent=1 // pred_check_branch
      %649 = sbr.rel (%p647) target = $region25
    $region24: #{tpu_custom_call.1} parent=1 // pred_region
      %v650 = vld [vmem:[#allocation3] sm:$0x3]
      %651 = vst [vmem:[#allocation10] sm:$0x3] %v650
      %v652 = vld [vmem:[#allocation2] sm:$0x3]
      %v653 = vld [vmem:[#allocation4] sm:$0x3]
      %655 = vset.pattern.permute.xlu0 0
      %656 = vperm.xlu0 %655, %v653
      %v657 = vpop.permute.xlu0 %656
      %v659 = vrcp.pop %v657
      %v660 = vmul.f32 %v657, %v659
      %v661 = vsub.f32 1.0, %v660
      %v662 = vmul.f32 %v659, %v661
      %v663 = vadd.f32 %v659, %v662
      %vm664 = vweird.f32 %v657
      %vm665 = vweird.f32 %v659
      %vm666 = vmor %vm664, %vm665
      %v667 = vsel %vm666, %v659, %v663
      %v668 = vand.u32 2147483647, %v657
      %vm669 = vcmp.eq.f32.partialorder %v668, 8.507059e+37
      %v670 = vand.u32 %v657, 2147483648
      %v671 = vor.u32 1.1754944e-38, %v670
      %v672 = vsel %vm669, %v671, %v667
      %v673 = vmul.f32 %v652, %v672
      %674 = vst [vmem:[#allocation11] sm:$0x3] %v673
    $region25: #{tpu_custom_call.1} parent=1 // pred_fallthru
      _
    // Predicated region
    $region26: #{tpu_custom_call.1} parent=1 // pred_check
      _
    $region27: #{tpu_custom_call.1} parent=1 // pred_check_branch
      %676 = sbr.rel (0) target = $region29
    $region28: #{tpu_custom_call.1} parent=1 // pred_region
      %678 = vsyncadd [#allocation7], 0
      %s680 = sshll.u32 [#allocation10], 4
      %s681 = int_to_ptr.vmem [resolvable:$true] %s680
      %s682 = sshll.u32 %s2, 4
      %s683 = int_to_ptr.hbm [resolvable:$true] %s682
      %685 = dma.vmem_to_hbm [thread:$0]  %s681, 32, %s683, [#allocation7]
    $region29: #{tpu_custom_call.1} parent=1 // pred_fallthru
      _
    // Predicated region
    $region30: #{tpu_custom_call.1} parent=1 // pred_check
      _
    $region31: #{tpu_custom_call.1} parent=1 // pred_check_branch
      %687 = sbr.rel (0) target = $region33
    $region32: #{tpu_custom_call.1} parent=1 // pred_region
      %689 = vsyncadd [#allocation12], 0
      %s691 = sshll.u32 [#allocation11], 4
      %s692 = int_to_ptr.vmem [resolvable:$true] %s691
      %s693 = sshll.u32 %s3, 4
      %s694 = int_to_ptr.hbm [resolvable:$true] %s693
      %696 = dma.vmem_to_hbm [thread:$0]  %s692, 32, %s694, [#allocation12]
    $region33: #{tpu_custom_call.1} parent=1 // pred_fallthru
      _
    // Predicated region
    $region34: #{tpu_custom_call.1} parent=1 // pred_check
      _
    $region35: #{tpu_custom_call.1} parent=1 // pred_check_branch
      %698 = sbr.rel (0) target = $region37
    $region36: #{tpu_custom_call.1} parent=1 // pred_region
      %700 = dma.done [#allocation7], 32
    $region37: #{tpu_custom_call.1} parent=1 // pred_fallthru
      _
    // Predicated region
    $region38: #{tpu_custom_call.1} parent=1 // pred_check
      _
    $region39: #{tpu_custom_call.1} parent=1 // pred_check_branch
      %702 = sbr.rel (0) target = $region41
    $region40: #{tpu_custom_call.1} parent=1 // pred_region
      %704 = dma.done [#allocation12], 32
    $region41: #{tpu_custom_call.1} parent=1 // pred_fallthru
      _
    %705 = vsyncpa [#allocation6], 1
    %706 = vsyncpa [#allocation9], 1
    %707 = vsyncpa [#allocation7], 1
    %708 = vsyncpa [#allocation12], 1

</llo_original>
